<compile_context>
chip_gen: v5e
topology: v5e:2x2
jax: 0.10.0
libtpu: 0.0.40
codegen_flags: <defaults>
</compile_context>

<pallas_src>
import jax
import jax.numpy as jnp
from jax.experimental import pallas as pl
from jax.experimental.pallas import tpu as pltpu


def _round_up(x, m):
    return (x + m - 1) // m * m


def _embed_action_kernel(idx_ref, table_ref, out_ref):
    # idx_ref:   (TB, 1) int32, action id per row of this batch tile (VMEM)
    # table_ref: (num_actions, latent_padded) resident embedding table (VMEM)
    # out_ref:   (TB, latent_padded)
    tb = out_ref.shape[0]
    num_actions = table_ref.shape[0]

    idx = idx_ref[...]                                               # (TB, 1)
    iota = jax.lax.broadcasted_iota(jnp.int32, (tb, num_actions), 1)
    onehot = (iota == idx).astype(table_ref.dtype)                   # (TB, NA)
    gathered = jnp.dot(onehot, table_ref[...],
                       preferred_element_type=jnp.float32)           # MXU gather
    out_ref[...] = gathered.astype(out_ref.dtype)


def embed_action(inp, action_embedding, *, block_batch=128):
    """inp: (B, F) float array whose first column holds action ids.
    action_embedding: (num_actions, latent_dim).
    returns: (B, latent_dim) with dtype of action_embedding."""
    num_actions, latent_dim = action_embedding.shape
    dtype = action_embedding.dtype

    # Index extraction: float -> int32 truncates toward zero like torch .long()
    # for non-negative ids; clip so garbage ids cannot escape the table.
    idx = jnp.clip(inp[:, 0].astype(jnp.int32), 0, num_actions - 1)
    batch = idx.shape[0]

    # Lane-dense output: pad latent dim to a multiple of 128 (unmasked stores).
    latent_padded = _round_up(latent_dim, 128)
    table = action_embedding
    if latent_padded != latent_dim:
        table = jnp.pad(action_embedding,
                        ((0, 0), (0, latent_padded - latent_dim)))

    # Sublane-dense batch tiles: TB multiple of 16 (covers f32 and bf16 tiling).
    tb = min(block_batch, _round_up(batch, 16))
    padded_batch = _round_up(batch, tb)
    idx2d = jnp.pad(idx, (0, padded_batch - batch)).reshape(padded_batch, 1)

    grid = (padded_batch // tb,)

    # VMEM budget: resident table (double-buffered by the pipeline) + in/out
    # tiles + headroom.  Capped at v7x's 64 MiB physical VMEM.
    itemsize = jnp.dtype(dtype).itemsize
    table_bytes = num_actions * latent_padded * itemsize
    out_tile_bytes = tb * latent_padded * itemsize
    idx_tile_bytes = tb * 4
    vmem_budget = 2 * table_bytes + 4 * (out_tile_bytes + idx_tile_bytes) + (1 << 20)
    vmem_limit = int(min(max(vmem_budget, 4 << 20), 64 << 20))
    # TODO(synk): if the padded table exceeds the v7x budget (~24-28 MiB), add a
    # latent (column) grid axis so each step holds a (num_actions, COL_TILE) slab.

    out = pl.pallas_call(
        _embed_action_kernel,
        grid=grid,
        in_specs=[
            # Per-tile index column.
            pl.BlockSpec((tb, 1), lambda i: (i, 0)),
            # Whole embedding table resident in VMEM across all grid steps.
            pl.BlockSpec((num_actions, latent_padded), lambda i: (0, 0)),
        ],
        out_specs=pl.BlockSpec((tb, latent_padded), lambda i: (i, 0)),
        out_shape=jax.ShapeDtypeStruct((padded_batch, latent_padded), dtype),
        compiler_params=pltpu.CompilerParams(
            dimension_semantics=("parallel",),
            vmem_limit_bytes=vmem_limit),
    )(idx2d, table)

    return out[:batch, :latent_dim]


if __name__ == "__main__":
    key = jax.random.PRNGKey(0)
    k_emb, k_idx = jax.random.split(key)

    batch = 2
    num_actions = 8
    latent_dim = 32

    # Deterministic "randn" parameter init (mirrors torch.randn in __init__).
    action_embedding = jax.random.normal(
        k_emb, (num_actions, latent_dim), dtype=jnp.float32)

    # Input: (batch, 1) float tensor whose first column holds action indices
    # (matches how the PyTorch module consumes it: input[:, 0].long()).
    idx_int = jax.random.randint(k_idx, (batch,), 0, num_actions)
    inp = idx_int.astype(jnp.float32)[:, None]

    out = embed_action(inp, action_embedding)
    out = jax.block_until_ready(out)

    # Reference check (plain JAX gather).
    ref = jnp.take(action_embedding, idx_int, axis=0)
    assert out.shape == (batch, latent_dim)
    assert out.dtype == action_embedding.dtype
    assert jnp.allclose(out, ref), "mismatch vs reference gather"

    print("KERNEL_OK")
</pallas_src>

<mosaic_0001>
module attributes {stable_mosaic.version = 11 : i64} {
  func.func @_embed_action_kernel(%arg0: i32, %arg1: memref<16x1xi32, #tpu.memory_space<vmem>>, %arg2: memref<8x128xf32, #tpu.memory_space<vmem>>, %arg3: memref<16x128xf32, #tpu.memory_space<vmem>>) attributes {dimension_semantics = [#tpu.dimension_semantics<parallel>], iteration_bounds = array<i64: 1>, scalar_prefetch = 0 : i64, scratch_operands = 0 : i64, tpu.core_type = #tpu.core_type<tc>, window_params = [{transform_indices = @transform_0, window_bounds = array<i64: 16, 1>}, {pipeline_mode = #tpu.pipeline_mode<synchronous>, transform_indices = @transform_1, window_bounds = array<i64: 8, 128>}, {transform_indices = @transform_2, window_bounds = array<i64: 16, 128>}]} {
    %c0 = arith.constant 0 : index
    %c0_0 = arith.constant 0 : index
    %0 = vector.load %arg1[%c0, %c0_0] : memref<16x1xi32, #tpu.memory_space<vmem>>, vector<16x1xi32>
    %1 = tpu.iota {dimensions = array<i32: 1>} : vector<16x8xi32>
    %2 = vector.broadcast %0 : vector<16x1xi32> to vector<16x8xi32>
    %3 = arith.cmpi eq, %1, %2 : vector<16x8xi32>
    %4 = arith.extui %3 : vector<16x8xi1> to vector<16x8xi32>
    %5 = arith.sitofp %4 : vector<16x8xi32> to vector<16x8xf32>
    %c0_1 = arith.constant 0 : index
    %c0_2 = arith.constant 0 : index
    %6 = vector.load %arg2[%c0_1, %c0_2] : memref<8x128xf32, #tpu.memory_space<vmem>>, vector<8x128xf32>
    %cst = arith.constant dense<0.000000e+00> : vector<16x128xf32>
    %7 = tpu.matmul %5, %6, %cst {dimension_numbers = #tpu.dot_dimension_numbers<[1], [0], [0], [1], [0, 0, 1, 1], [], []>} : vector<16x8xf32>, vector<8x128xf32>, vector<16x128xf32> -> vector<16x128xf32>
    %c0_3 = arith.constant 0 : index
    %c0_4 = arith.constant 0 : index
    %8 = vector.load %arg3[%c0_3, %c0_4] : memref<16x128xf32, #tpu.memory_space<vmem>>, vector<16x128xf32>
    tpu.vector_store %arg3[%c0_3, %c0_4], %7 {strides = array<i32>} : memref<16x128xf32, #tpu.memory_space<vmem>>, vector<16x128xf32>,
    return
  }
  func.func @transform_0(%arg0: i32) -> (i32, i32) {
    %c0_i32 = arith.constant 0 : i32
    %c0_i32_0 = arith.constant 0 : i32
    return %arg0, %c0_i32 : i32, i32
  }
  func.func @transform_1(%arg0: i32) -> (i32, i32) {
    %c0_i32 = arith.constant 0 : i32
    %c0_i32_0 = arith.constant 0 : i32
    %c0_i32_1 = arith.constant 0 : i32
    return %c0_i32, %c0_i32_0 : i32, i32
  }
  func.func @transform_2(%arg0: i32) -> (i32, i32) {
    %c0_i32 = arith.constant 0 : i32
    %c0_i32_0 = arith.constant 0 : i32
    return %arg0, %c0_i32 : i32, i32
  }
}

</mosaic_0001>

<llo_original>
// kernel: tpu_custom_call.1
$region0: #{tpu_custom_call.1}
  #allocation0 [shape = 'u32[]', space=smem, size = 0x4, offset = 0x4, fixed_abs, tag = 'smem constant byte address 0x4 - core index']
  #allocation1 [shape = 'u32[72,128]{1,0:T(1,128)}', space=vmem, size = 0x9000, scoped, tag = 'internal scratch']
  %s0 = inlined_call_operand.vmem [shape: s32[16,1], index: 0, kind: input, shape index: {}]
  %s1 = inlined_call_operand.vmem [shape: f32[8,128], index: 1, kind: input, shape index: {}]
  %s2 = inlined_call_operand.hbm [shape: f32[16,128], index: 2, kind: output, shape index: {}]
  %s3 = sld [smem:[#allocation0]]
  $region18: #{tpu_custom_call.1} parent=0
    _
  %s5 = ssub.s32 1, %s3
  %s6 = scalar_select 0, %s5, %s3
  $region1: #{tpu_custom_call.1} parent=0
    #allocation2 [shape = 'u8[8192]{0}', space=vmem, size = 0x2000, scoped, tag = 'output window, operand 0, single buffered']
    #allocation3 [shape = 's32[1]{0}', space=sflag, size = 0x4, scoped, tag = 'scoped memory for tpu_custom_call.1']
    %7 = vsyncpa [#allocation3], 0
    // Predicated region
    $region2: #{tpu_custom_call.1} parent=1 // pred_check
      _
    $region3: #{tpu_custom_call.1} parent=1 // pred_check_branch
      %9 = sbr.rel (0) target = $region5
    $region4: #{tpu_custom_call.1} parent=1 // pred_region
      _
    $region5: #{tpu_custom_call.1} parent=1 // pred_fallthru
      _
    // Predicated region
    $region6: #{tpu_custom_call.1} parent=1 // pred_check
      _
    $region7: #{tpu_custom_call.1} parent=1 // pred_check_branch
      %11 = sbr.rel (0) target = $region9
    $region8: #{tpu_custom_call.1} parent=1 // pred_region
      _
    $region9: #{tpu_custom_call.1} parent=1 // pred_fallthru
      _
    %v12 = vld [vmem:[%s0] sm:$0xff]
    %v13 = vld [vmem:[%s0 + $0x8] sm:$0xff]
    %v14 = vlaneseq
    %v15 = vand.u32 %v14, 127
    %16 = vset.pattern.permute.xlu0 0
    %17 = vperm.xlu0 %16, %v12
    %v18 = vpop.permute.xlu0 %17
    %19 = vset.pattern.permute.xlu0 0
    %20 = vperm.xlu0 %19, %v13
    %v21 = vpop.permute.xlu0 %20
    %vm22 = vcmp.eq.s32.totalorder %v15, %v18
    %vm23 = vcmp.eq.s32.totalorder %v15, %v21
    %v24 = vsel %vm22, 1, 0
    %v25 = vsel %vm23, 1, 0
    %v26 = vcvt.s32.f32 %v24
    %v27 = vcvt.s32.f32 %v25
    %v28 = vld [vmem:[%s1] sm:$0xff]
    %vm29 = vcmask 64512
    %v31 = vsel %vm29, %v26, 0
    %v34 = vsel %vm29, %v27, 0
    %36 = vmatpush.msra.mxu0 0.0
    %37 = vmatpush.msra.mxu0 0.0
    %38 = vmatpush.msra.mxu0 0.0
    %39 = vmatpush.msra.mxu0 0.0
    %40 = vmatpush.msra.mxu0 0.0
    %41 = vmatpush.msra.mxu0 0.0
    %42 = vmatpush.msra.mxu0 0.0
    %43 = vmatpush.msra.mxu0 0.0
    %44 = vmatpush.msra.mxu0 0.0
    %45 = vmatpush.msra.mxu0 0.0
    %46 = vmatpush.msra.mxu0 0.0
    %47 = vmatpush.msra.mxu0 0.0
    %48 = vmatpush.msra.mxu0 0.0
    %49 = vmatpush.msra.mxu0 0.0
    %50 = vmatpush.msra.mxu0 0.0
    %51 = vmatpush.msra.mxu0 %v28
    %52 = vmatmul.f32.gmra.mxu0 %v31
    %v53 = vpop.f32.mrf.mxu0
    %v54 = vadd.f32 0.0, %v53
    %55 = vmatmul.f32.gmra.mxu0 %v34
    %v56 = vpop.f32.mrf.mxu0
    %v57 = vadd.f32 0.0, %v56
    %58 = vdwg.mxu0
    %59 = vst [vmem:[#allocation2] sm:$0xff] %v54
    %60 = vst [vmem:[#allocation2 + $0x8] sm:$0xff] %v57
    // Predicated region
    $region10: #{tpu_custom_call.1} parent=1 // pred_check
      _
    $region11: #{tpu_custom_call.1} parent=1 // pred_check_branch
      %62 = sbr.rel (0) target = $region13
    $region12: #{tpu_custom_call.1} parent=1 // pred_region
      %64 = vsyncadd [#allocation3], 0
      %s65 = sshll.u32 [#allocation2], 4
      %s66 = int_to_ptr.vmem [resolvable:$true] %s65
      %s67 = sshll.u32 %s2, 4
      %s68 = int_to_ptr.hbm [resolvable:$true] %s67
      %73 = dma.vmem_to_hbm [thread:$0]  %s66, 256, %s68, [#allocation3], 128, 128, 8
    $region13: #{tpu_custom_call.1} parent=1 // pred_fallthru
      _
    // Predicated region
    $region14: #{tpu_custom_call.1} parent=1 // pred_check
      _
    $region15: #{tpu_custom_call.1} parent=1 // pred_check_branch
      %75 = sbr.rel (0) target = $region17
    $region16: #{tpu_custom_call.1} parent=1 // pred_region
      %77 = dma.done [#allocation3], 256
    $region17: #{tpu_custom_call.1} parent=1 // pred_fallthru
      _
    %78 = vsyncpa [#allocation3], 1

</llo_original>
